<compile_context>
chip_gen: v7x
topology: tpu7x:2x2x1
jax: 0.10.0
libtpu: 0.0.40
codegen_flags: <defaults>
</compile_context>

<pallas_src>
import numpy as np
import jax
import jax.numpy as jnp
from jax.experimental import pallas as pl
from jax.experimental.pallas import tpu as pltpu


def _round_up(x, m):
    return ((x + m - 1) // m) * m


def _regression_head_kernel(x_ref, w1_ref, b1_ref, w2_ref, b2_ref,
                            w3_ref, b3_ref, w4_ref, b4_ref, o_ref):
    x = x_ref[...].astype(jnp.float32)

    h = jnp.dot(x, w1_ref[...], preferred_element_type=jnp.float32) + b1_ref[...]
    h = jnp.maximum(h, 0.0)
    # dropout(p=0.1): identity in eval mode.

    h = jnp.dot(h, w2_ref[...], preferred_element_type=jnp.float32) + b2_ref[...]
    h = jnp.maximum(h, 0.0)

    h = jnp.dot(h, w3_ref[...], preferred_element_type=jnp.float32) + b3_ref[...]
    h = jnp.maximum(h, 0.0)

    # layer4: (TM, D3) x (D3, 1) done as broadcast-mul + lane reduction (VPU+XLU).
    out = jnp.sum(h * w4_ref[...], axis=-1, keepdims=True) + b4_ref[...]
    o_ref[...] = out.astype(o_ref.dtype)


def regression_head_forward(x, params, *, tm_target=1024):
    """Forward pass of regressoionHead.

    x: [seq_len, batch, d_embedding]
    params: dict with (in, out)-layout weights:
        w1 [D, D//2], b1 [D//2], w2 [D//2, D//4], b2 [D//4],
        w3 [D//4, D//8], b3 [D//8], w4 [D//8, 1], b4 [1]
    Returns: [seq_len, batch, 1]
    """
    w1, b1 = params["w1"], params["b1"]
    w2, b2 = params["w2"], params["b2"]
    w3, b3 = params["w3"], params["b3"]
    w4, b4 = params["w4"], params["b4"]

    S, B, D = x.shape
    D1, D2, D3 = w1.shape[1], w2.shape[1], w3.shape[1]

    # Flatten rows; pick a large row tile (multiple of 8 sublanes for f32).
    N = S * B
    x2 = x.reshape(N, D)
    tm = int(min(tm_target, _round_up(N, 8)))
    tm = max(8, (tm // 8) * 8)
    n_pad = _round_up(N, tm)
    if n_pad != N:
        x2 = jnp.pad(x2, ((0, n_pad - N), (0, 0)))
    grid = (n_pad // tm,)

    # 2-D layouts for biases / final-layer weight (row vector).
    b1r = b1.reshape(1, D1)
    b2r = b2.reshape(1, D2)
    b3r = b3.reshape(1, D3)
    w4r = w4.reshape(1, D3)
    b4r = b4.reshape(1, 1)

    x_spec = pl.BlockSpec((tm, D), lambda i: (i, 0))
    o_spec = pl.BlockSpec((tm, 1), lambda i: (i, 0))

    def full(a):  # full-extent block, same for every grid step (stays resident)
        return pl.BlockSpec(a.shape, lambda i: (0, 0))

    itemsize = int(np.dtype(x.dtype).itemsize)
    weight_bytes = sum(int(np.prod(a.shape)) * int(np.dtype(a.dtype).itemsize)
                       for a in (w1, b1r, w2, b2r, w3, b3r, w4r, b4r))
    # double-buffered x/out tiles + weights + f32 intermediates
    io_bytes = 2 * (tm * D + tm) * itemsize
    act_bytes = 4 * tm * (D1 + D2 + D3 + 1)
    vmem_limit = int(min(max(2 * (io_bytes + 2 * weight_bytes + act_bytes),
                             8 * 2**20), 32 * 2**20))

    flops = 2 * n_pad * (D * D1 + D1 * D2 + D2 * D3 + D3)
    bytes_accessed = (n_pad * D + n_pad) * itemsize + weight_bytes
    cost = pl.CostEstimate(flops=flops, transcendentals=0,
                           bytes_accessed=bytes_accessed)

    out = pl.pallas_call(
        _regression_head_kernel,
        out_shape=jax.ShapeDtypeStruct((n_pad, 1), x.dtype),
        grid_spec=pltpu.PrefetchScalarGridSpec(
            num_scalar_prefetch=0,
            grid=grid,
            in_specs=[x_spec, full(w1), full(b1r), full(w2), full(b2r),
                      full(w3), full(b3r), full(w4r), full(b4r)],
            out_specs=o_spec,
        ),
        compiler_params=pltpu.CompilerParams(
            dimension_semantics=("parallel",),   # shards rows across TCs on v7x
            vmem_limit_bytes=vmem_limit,
        ),
        cost_estimate=cost,
    )(x2, w1, b1r, w2, b2r, w3, b3r, w4r, b4r)

    return out[:N].reshape(S, B, 1)


if __name__ == "__main__":
    key = jax.random.PRNGKey(0)
    ks = jax.random.split(key, 9)

    S, B, D = 8, 2, 32                 # seq_len, batch, d_embedding
    D1, D2, D3 = D // 2, D // 4, D // 8

    x = jax.random.normal(ks[0], (S, B, D), dtype=jnp.float32)

    def init_linear(kw, kb, fan_in, fan_out):
        bound = 1.0 / np.sqrt(fan_in)
        w = jax.random.uniform(kw, (fan_in, fan_out), jnp.float32, -bound, bound)
        b = jax.random.uniform(kb, (fan_out,), jnp.float32, -bound, bound)
        return w, b

    w1, b1 = init_linear(ks[1], ks[2], D, D1)
    w2, b2 = init_linear(ks[3], ks[4], D1, D2)
    w3, b3 = init_linear(ks[5], ks[6], D2, D3)
    w4, b4 = init_linear(ks[7], ks[8], D3, 1)

    params = dict(w1=w1, b1=b1, w2=w2, b2=b2, w3=w3, b3=b3, w4=w4, b4=b4)

    out = regression_head_forward(x, params)
    out = jax.block_until_ready(out)

    # Pure-JAX reference (dropout is identity in eval mode).
    relu = lambda a: jnp.maximum(a, 0.0)
    h = relu(x @ w1 + b1)
    h = relu(h @ w2 + b2)
    h = relu(h @ w3 + b3)
    ref = h @ w4 + b4

    assert out.shape == (S, B, 1) and out.dtype == ref.dtype
    assert jnp.allclose(out, ref, rtol=1e-5, atol=1e-5), "mismatch vs pure-JAX reference"

    print("KERNEL_OK")
</pallas_src>

<mosaic_0001>
module attributes {stable_mosaic.version = 11 : i64} {
  func.func @_regression_head_kernel(%arg0: i32, %arg1: memref<16x32xf32, #tpu.memory_space<vmem>>, %arg2: memref<32x16xf32, #tpu.memory_space<vmem>>, %arg3: memref<1x16xf32, #tpu.memory_space<vmem>>, %arg4: memref<16x8xf32, #tpu.memory_space<vmem>>, %arg5: memref<1x8xf32, #tpu.memory_space<vmem>>, %arg6: memref<8x4xf32, #tpu.memory_space<vmem>>, %arg7: memref<1x4xf32, #tpu.memory_space<vmem>>, %arg8: memref<1x4xf32, #tpu.memory_space<vmem>>, %arg9: memref<1x1xf32, #tpu.memory_space<vmem>>, %arg10: memref<16x1xf32, #tpu.memory_space<vmem>>) attributes {dimension_semantics = [#tpu.dimension_semantics<parallel>], iteration_bounds = array<i64: 1>, scalar_prefetch = 0 : i64, scratch_operands = 0 : i64, tpu.core_type = #tpu.core_type<tc>, window_params = [{transform_indices = @transform_0, window_bounds = array<i64: 16, 32>}, {pipeline_mode = #tpu.pipeline_mode<synchronous>, transform_indices = @transform_1, window_bounds = array<i64: 32, 16>}, {pipeline_mode = #tpu.pipeline_mode<synchronous>, transform_indices = @transform_2, window_bounds = array<i64: 1, 16>}, {pipeline_mode = #tpu.pipeline_mode<synchronous>, transform_indices = @transform_3, window_bounds = array<i64: 16, 8>}, {pipeline_mode = #tpu.pipeline_mode<synchronous>, transform_indices = @transform_4, window_bounds = array<i64: 1, 8>}, {pipeline_mode = #tpu.pipeline_mode<synchronous>, transform_indices = @transform_5, window_bounds = array<i64: 8, 4>}, {pipeline_mode = #tpu.pipeline_mode<synchronous>, transform_indices = @transform_6, window_bounds = array<i64: 1, 4>}, {pipeline_mode = #tpu.pipeline_mode<synchronous>, transform_indices = @transform_7, window_bounds = array<i64: 1, 4>}, {pipeline_mode = #tpu.pipeline_mode<synchronous>, transform_indices = @transform_8, window_bounds = array<i64: 1, 1>}, {transform_indices = @transform_9, window_bounds = array<i64: 16, 1>}]} {
    %c0 = arith.constant 0 : index
    %c0_0 = arith.constant 0 : index
    %0 = vector.load %arg1[%c0, %c0_0] : memref<16x32xf32, #tpu.memory_space<vmem>>, vector<16x32xf32>
    %c0_1 = arith.constant 0 : index
    %c0_2 = arith.constant 0 : index
    %1 = vector.load %arg2[%c0_1, %c0_2] : memref<32x16xf32, #tpu.memory_space<vmem>>, vector<32x16xf32>
    %cst = arith.constant dense<0.000000e+00> : vector<16x16xf32>
    %2 = tpu.matmul %0, %1, %cst {dimension_numbers = #tpu.dot_dimension_numbers<[1], [0], [0], [1], [0, 0, 1, 1], [], []>} : vector<16x32xf32>, vector<32x16xf32>, vector<16x16xf32> -> vector<16x16xf32>
    %c0_3 = arith.constant 0 : index
    %c0_4 = arith.constant 0 : index
    %3 = vector.load %arg3[%c0_3, %c0_4] : memref<1x16xf32, #tpu.memory_space<vmem>>, vector<1x16xf32>
    %4 = vector.broadcast %3 : vector<1x16xf32> to vector<16x16xf32>
    %5 = arith.addf %2, %4 : vector<16x16xf32>
    %cst_5 = arith.constant 0.000000e+00 : f32
    %6 = vector.broadcast %cst_5 : f32 to vector<16x16xf32>
    %7 = arith.maximumf %5, %6 : vector<16x16xf32>
    %c0_6 = arith.constant 0 : index
    %c0_7 = arith.constant 0 : index
    %8 = vector.load %arg4[%c0_6, %c0_7] : memref<16x8xf32, #tpu.memory_space<vmem>>, vector<16x8xf32>
    %cst_8 = arith.constant dense<0.000000e+00> : vector<16x8xf32>
    %9 = tpu.matmul %7, %8, %cst_8 {dimension_numbers = #tpu.dot_dimension_numbers<[1], [0], [0], [1], [0, 0, 1, 1], [], []>} : vector<16x16xf32>, vector<16x8xf32>, vector<16x8xf32> -> vector<16x8xf32>
    %c0_9 = arith.constant 0 : index
    %c0_10 = arith.constant 0 : index
    %10 = vector.load %arg5[%c0_9, %c0_10] : memref<1x8xf32, #tpu.memory_space<vmem>>, vector<1x8xf32>
    %11 = vector.broadcast %10 : vector<1x8xf32> to vector<16x8xf32>
    %12 = arith.addf %9, %11 : vector<16x8xf32>
    %cst_11 = arith.constant 0.000000e+00 : f32
    %13 = vector.broadcast %cst_11 : f32 to vector<16x8xf32>
    %14 = arith.maximumf %12, %13 : vector<16x8xf32>
    %c0_12 = arith.constant 0 : index
    %c0_13 = arith.constant 0 : index
    %15 = vector.load %arg6[%c0_12, %c0_13] : memref<8x4xf32, #tpu.memory_space<vmem>>, vector<8x4xf32>
    %cst_14 = arith.constant dense<0.000000e+00> : vector<16x4xf32>
    %16 = tpu.matmul %14, %15, %cst_14 {dimension_numbers = #tpu.dot_dimension_numbers<[1], [0], [0], [1], [0, 0, 1, 1], [], []>} : vector<16x8xf32>, vector<8x4xf32>, vector<16x4xf32> -> vector<16x4xf32>
    %c0_15 = arith.constant 0 : index
    %c0_16 = arith.constant 0 : index
    %17 = vector.load %arg7[%c0_15, %c0_16] : memref<1x4xf32, #tpu.memory_space<vmem>>, vector<1x4xf32>
    %18 = vector.broadcast %17 : vector<1x4xf32> to vector<16x4xf32>
    %19 = arith.addf %16, %18 : vector<16x4xf32>
    %cst_17 = arith.constant 0.000000e+00 : f32
    %20 = vector.broadcast %cst_17 : f32 to vector<16x4xf32>
    %21 = arith.maximumf %19, %20 : vector<16x4xf32>
    %c0_18 = arith.constant 0 : index
    %c0_19 = arith.constant 0 : index
    %22 = vector.load %arg8[%c0_18, %c0_19] : memref<1x4xf32, #tpu.memory_space<vmem>>, vector<1x4xf32>
    %23 = vector.broadcast %22 : vector<1x4xf32> to vector<16x4xf32>
    %24 = arith.mulf %21, %23 : vector<16x4xf32>
    %cst_20 = arith.constant dense<0.000000e+00> : vector<16xf32>
    %25 = vector.multi_reduction <add>, %24, %cst_20 [1] : vector<16x4xf32> to vector<16xf32>
    %26 = vector.shape_cast %25 : vector<16xf32> to vector<16x1xf32>
    %c0_21 = arith.constant 0 : index
    %c0_22 = arith.constant 0 : index
    %27 = vector.load %arg9[%c0_21, %c0_22] : memref<1x1xf32, #tpu.memory_space<vmem>>, vector<1x1xf32>
    %28 = vector.broadcast %27 : vector<1x1xf32> to vector<16x1xf32>
    %29 = arith.addf %26, %28 : vector<16x1xf32>
    %c0_23 = arith.constant 0 : index
    %c0_24 = arith.constant 0 : index
    %30 = vector.load %arg10[%c0_23, %c0_24] : memref<16x1xf32, #tpu.memory_space<vmem>>, vector<16x1xf32>
    tpu.vector_store %arg10[%c0_23, %c0_24], %29 {strides = array<i32>} : memref<16x1xf32, #tpu.memory_space<vmem>>, vector<16x1xf32>,
    return
  }
  func.func @transform_0(%arg0: i32) -> (i32, i32) {
    %c0_i32 = arith.constant 0 : i32
    %c0_i32_0 = arith.constant 0 : i32
    return %arg0, %c0_i32 : i32, i32
  }
  func.func @transform_1(%arg0: i32) -> (i32, i32) {
    %c0_i32 = arith.constant 0 : i32
    %c0_i32_0 = arith.constant 0 : i32
    %c0_i32_1 = arith.constant 0 : i32
    return %c0_i32, %c0_i32_0 : i32, i32
  }
  func.func @transform_2(%arg0: i32) -> (i32, i32) {
    %c0_i32 = arith.constant 0 : i32
    %c0_i32_0 = arith.constant 0 : i32
    %c0_i32_1 = arith.constant 0 : i32
    return %c0_i32, %c0_i32_0 : i32, i32
  }
  func.func @transform_3(%arg0: i32) -> (i32, i32) {
    %c0_i32 = arith.constant 0 : i32
    %c0_i32_0 = arith.constant 0 : i32
    %c0_i32_1 = arith.constant 0 : i32
    return %c0_i32, %c0_i32_0 : i32, i32
  }
  func.func @transform_4(%arg0: i32) -> (i32, i32) {
    %c0_i32 = arith.constant 0 : i32
    %c0_i32_0 = arith.constant 0 : i32
    %c0_i32_1 = arith.constant 0 : i32
    return %c0_i32, %c0_i32_0 : i32, i32
  }
  func.func @transform_5(%arg0: i32) -> (i32, i32) {
    %c0_i32 = arith.constant 0 : i32
    %c0_i32_0 = arith.constant 0 : i32
    %c0_i32_1 = arith.constant 0 : i32
    return %c0_i32, %c0_i32_0 : i32, i32
  }
  func.func @transform_6(%arg0: i32) -> (i32, i32) {
    %c0_i32 = arith.constant 0 : i32
    %c0_i32_0 = arith.constant 0 : i32
    %c0_i32_1 = arith.constant 0 : i32
    return %c0_i32, %c0_i32_0 : i32, i32
  }
  func.func @transform_7(%arg0: i32) -> (i32, i32) {
    %c0_i32 = arith.constant 0 : i32
    %c0_i32_0 = arith.constant 0 : i32
    %c0_i32_1 = arith.constant 0 : i32
    return %c0_i32, %c0_i32_0 : i32, i32
  }
  func.func @transform_8(%arg0: i32) -> (i32, i32) {
    %c0_i32 = arith.constant 0 : i32
    %c0_i32_0 = arith.constant 0 : i32
    %c0_i32_1 = arith.constant 0 : i32
    return %c0_i32, %c0_i32_0 : i32, i32
  }
  func.func @transform_9(%arg0: i32) -> (i32, i32) {
    %c0_i32 = arith.constant 0 : i32
    %c0_i32_0 = arith.constant 0 : i32
    return %arg0, %c0_i32 : i32, i32
  }
}

</mosaic_0001>

<llo_original>
// kernel: tpu_custom_call.1
$region0: #{tpu_custom_call.1}
  #allocation0 [shape = 'u32[]', space=smem, size = 0x4, offset = 0x4, fixed_abs, tag = 'smem constant byte address 0x4 - core index']
  #allocation1 [shape = 'u32[144,128]{1,0:T(1,128)}', space=vmem, size = 0x12000, scoped, tag = 'internal scratch']
  #allocation2 [shape = 'f32[1,1]{1,0:T(1,128)S(1)}', space=vmem, size = 0x200, scoped, tag = 'scoped memory for tpu_custom_call.1']
  %s0 = inlined_call_operand.vmem [shape: f32[16,32], index: 0, kind: input, shape index: {}]
  %s1 = inlined_call_operand.vmem [shape: f32[32,16], index: 1, kind: input, shape index: {}]
  %s2 = inlined_call_operand.vmem [shape: f32[1,16], index: 2, kind: input, shape index: {}]
  %s3 = inlined_call_operand.vmem [shape: f32[16,8], index: 3, kind: input, shape index: {}]
  %s4 = inlined_call_operand.vmem [shape: f32[1,8], index: 4, kind: input, shape index: {}]
  %s5 = inlined_call_operand.vmem [shape: f32[8,4], index: 5, kind: input, shape index: {}]
  %s6 = inlined_call_operand.vmem [shape: f32[1,4], index: 6, kind: input, shape index: {}]
  %s7 = inlined_call_operand.vmem [shape: f32[1,4], index: 7, kind: input, shape index: {}]
  %s8 = inlined_call_operand.<no memory space> [shape: f32[1,1], index: 8, kind: input, shape index: {}]
  %s9 = inlined_call_operand.vmem [shape: f32[16,1], index: 9, kind: output, shape index: {}]
  %s10 = sld [smem:[#allocation0]]
  $region46: #{tpu_custom_call.1} parent=0
    _
  %s12 = ssub.s32 1, %s10
  %s13 = scalar_select 0, %s12, %s10
  %v14 = vstv %s8
  %15 = vst [vmem:[#allocation2] sm:$0x1] %v14
  // Predicated region
  $region2: #{tpu_custom_call.1} parent=0 // pred_check
    _
  $region3: #{tpu_custom_call.1} parent=0 // pred_check_branch
    %17 = sbr.rel (0) target = $region5
  $region4: #{tpu_custom_call.1} parent=0 // pred_region
    _
  $region5: #{tpu_custom_call.1} parent=0 // pred_fallthru
    _
  // Predicated region
  $region6: #{tpu_custom_call.1} parent=0 // pred_check
    _
  $region7: #{tpu_custom_call.1} parent=0 // pred_check_branch
    %19 = sbr.rel (0) target = $region9
  $region8: #{tpu_custom_call.1} parent=0 // pred_region
    _
  $region9: #{tpu_custom_call.1} parent=0 // pred_fallthru
    _
  // Predicated region
  $region10: #{tpu_custom_call.1} parent=0 // pred_check
    _
  $region11: #{tpu_custom_call.1} parent=0 // pred_check_branch
    %21 = sbr.rel (0) target = $region13
  $region12: #{tpu_custom_call.1} parent=0 // pred_region
    _
  $region13: #{tpu_custom_call.1} parent=0 // pred_fallthru
    _
  // Predicated region
  $region14: #{tpu_custom_call.1} parent=0 // pred_check
    _
  $region15: #{tpu_custom_call.1} parent=0 // pred_check_branch
    %23 = sbr.rel (0) target = $region17
  $region16: #{tpu_custom_call.1} parent=0 // pred_region
    _
  $region17: #{tpu_custom_call.1} parent=0 // pred_fallthru
    _
  // Predicated region
  $region18: #{tpu_custom_call.1} parent=0 // pred_check
    _
  $region19: #{tpu_custom_call.1} parent=0 // pred_check_branch
    %25 = sbr.rel (0) target = $region21
  $region20: #{tpu_custom_call.1} parent=0 // pred_region
    _
  $region21: #{tpu_custom_call.1} parent=0 // pred_fallthru
    _
  // Predicated region
  $region22: #{tpu_custom_call.1} parent=0 // pred_check
    _
  $region23: #{tpu_custom_call.1} parent=0 // pred_check_branch
    %27 = sbr.rel (0) target = $region25
  $region24: #{tpu_custom_call.1} parent=0 // pred_region
    _
  $region25: #{tpu_custom_call.1} parent=0 // pred_fallthru
    _
  // Predicated region
  $region26: #{tpu_custom_call.1} parent=0 // pred_check
    _
  $region27: #{tpu_custom_call.1} parent=0 // pred_check_branch
    %29 = sbr.rel (0) target = $region29
  $region28: #{tpu_custom_call.1} parent=0 // pred_region
    _
  $region29: #{tpu_custom_call.1} parent=0 // pred_fallthru
    _
  // Predicated region
  $region30: #{tpu_custom_call.1} parent=0 // pred_check
    _
  $region31: #{tpu_custom_call.1} parent=0 // pred_check_branch
    %31 = sbr.rel (0) target = $region33
  $region32: #{tpu_custom_call.1} parent=0 // pred_region
    _
  $region33: #{tpu_custom_call.1} parent=0 // pred_fallthru
    _
  // Predicated region
  $region34: #{tpu_custom_call.1} parent=0 // pred_check
    _
  $region35: #{tpu_custom_call.1} parent=0 // pred_check_branch
    %33 = sbr.rel (0) target = $region37
  $region36: #{tpu_custom_call.1} parent=0 // pred_region
    _
  $region37: #{tpu_custom_call.1} parent=0 // pred_fallthru
    _
  %v34 = vld [vmem:[%s0] sm:$0xff]
  %v35 = vld [vmem:[%s0 + $0x8] sm:$0xff]
  %v36 = vld [vmem:[%s1] sm:$0xff]
  %v37 = vld [vmem:[%s1 + $0x8] sm:$0xff]
  %v38 = vld [vmem:[%s1 + $0x10] sm:$0xff]
  %v39 = vld [vmem:[%s1 + $0x18] sm:$0xff]
  %v40 = vld [vmem:[%s2] sm:$0x1]
  %v42 = vlaneseq
  %v43 = vshrl.u32 %v42, 7
  %v44 = vsub.s32 0, %v43
  %v45 = vrot.slane %v40, %v44
  %vm47 = vcmask 261120
  %v49 = vsel %vm47, %v34, 0
  %v52 = vsel %vm47, %v35, 0
  %54 = vmatprep.subr.mxu0 0.0
  %55 = vmatpush1.msra.mxu0 %v36
  %56 = vmatprep.subr.mxu0 0.0
  %57 = vmatpush1.msra.mxu0 %v37
  %58 = vmatprep.subr.mxu0 0.0
  %59 = vmatpush1.msra.mxu0 %v38
  %60 = vmatprep.subr.mxu0 0.0
  %61 = vmatpush1.msra.mxu0 %v39
  %62 = vmatprep.subr.mxu0 0.0
  %63 = vmatpush1.msra.mxu0 0.0
  %64 = vmatprep.subr.mxu0 0.0
  %65 = vmatpush1.msra.mxu0 0.0
  %66 = vmatprep.subr.mxu0 0.0
  %67 = vmatpush1.msra.mxu0 0.0
  %68 = vmatprep.subr.mxu0 0.0
  %69 = vmatpush1.msra.mxu0 0.0
  %70 = vmatprep.subr.mxu0 0.0
  %71 = vmatpush1.msra.mxu0 0.0
  %72 = vmatprep.subr.mxu0 0.0
  %73 = vmatpush1.msra.mxu0 0.0
  %74 = vmatprep.subr.mxu0 0.0
  %75 = vmatpush1.msra.mxu0 0.0
  %76 = vmatprep.subr.mxu0 0.0
  %77 = vmatpush1.msra.mxu0 0.0
  %78 = vmatprep.subr.mxu0 0.0
  %79 = vmatpush1.msra.mxu0 0.0
  %80 = vmatprep.subr.mxu0 0.0
  %81 = vmatpush1.msra.mxu0 0.0
  %82 = vmatprep.subr.mxu0 0.0
  %83 = vmatpush1.msra.mxu0 0.0
  %84 = vmatprep.subr.mxu0 0.0
  %85 = vmatpush1.msra.mxu0 0.0
  %86 = vmatprep.subr.mxu0 0.0
  %87 = vmatpush1.msra.mxu0 0.0
  %88 = vmatprep.subr.mxu0 0.0
  %89 = vmatpush1.msra.mxu0 0.0
  %90 = vmatprep.subr.mxu0 0.0
  %91 = vmatpush1.msra.mxu0 0.0
  %92 = vmatprep.subr.mxu0 0.0
  %93 = vmatpush1.msra.mxu0 0.0
  %94 = vmatprep.subr.mxu0 0.0
  %95 = vmatpush1.msra.mxu0 0.0
  %96 = vmatprep.subr.mxu0 0.0
  %97 = vmatpush1.msra.mxu0 0.0
  %98 = vmatprep.subr.mxu0 0.0
  %99 = vmatpush1.msra.mxu0 0.0
  %100 = vmatprep.subr.mxu0 0.0
  %101 = vmatpush1.msra.mxu0 0.0
  %102 = vmatprep.subr.mxu0 0.0
  %103 = vmatpush1.msra.mxu0 0.0
  %104 = vmatprep.subr.mxu0 0.0
  %105 = vmatpush1.msra.mxu0 0.0
  %106 = vmatprep.subr.mxu0 0.0
  %107 = vmatpush1.msra.mxu0 0.0
  %108 = vmatprep.subr.mxu0 0.0
  %109 = vmatpush1.msra.mxu0 0.0
  %110 = vmatprep.subr.mxu0 0.0
  %111 = vmatpush1.msra.mxu0 0.0
  %112 = vmatprep.subr.mxu0 0.0
  %113 = vmatpush1.msra.mxu0 0.0
  %114 = vmatprep.subr.mxu0 0.0
  %115 = vmatpush1.msra.mxu0 0.0
  %116 = vmatprep.subr.mxu0 0.0
  %117 = vmatpush1.msra.mxu0 0.0
  %118 = vmatprep.mubr.f32.mxu0 0.0
  %119 = vmatmul.mubr.f32.gmra.mrb[0].mxu0 %v49
  %v120 = vpop.f32.mrb[0].mxu0
  %v121 = vadd.f32 %v45, %v120
  %v122 = vpop.f32.mrb[0].mxu0
  %123 = vmatprep.mubr.f32.mxu0 0.0
  %124 = vmatmul.mubr.f32.gmra.mrb[0].mxu0 %v52
  %v125 = vpop.f32.mrb[0].mxu0
  %v126 = vadd.f32 %v45, %v125
  %v127 = vpop.f32.mrb[0].mxu0
  %128 = vdwg.mxu0
  %v129 = vmax.f32 %v121, 0.0
  %v130 = vmax.f32 %v126, 0.0
  %v131 = vld [vmem:[%s3] sm:$0xff]
  %v132 = vld [vmem:[%s3 + $0x8] sm:$0xff]
  %v133 = vld [vmem:[%s4] sm:$0x1]
  %v135 = vlaneseq
  %v136 = vshrl.u32 %v135, 7
  %v137 = vsub.s32 0, %v136
  %v138 = vrot.slane %v133, %v137
  %vm140 = vcmask 130048
  %v142 = vsel %vm140, %v129, 0
  %v145 = vsel %vm140, %v130, 0
  %147 = vmatprep.subr.mxu0 0.0
  %148 = vmatpush1.msra.mxu0 %v131
  %149 = vmatprep.subr.mxu0 0.0
  %150 = vmatpush1.msra.mxu0 %v132
  %151 = vmatprep.subr.mxu0 0.0
  %152 = vmatpush1.msra.mxu0 0.0
  %153 = vmatprep.subr.mxu0 0.0
  %154 = vmatpush1.msra.mxu0 0.0
  %155 = vmatprep.subr.mxu0 0.0
  %156 = vmatpush1.msra.mxu0 0.0
  %157 = vmatprep.subr.mxu0 0.0
  %158 = vmatpush1.msra.mxu0 0.0
  %159 = vmatprep.subr.mxu0 0.0
  %160 = vmatpush1.msra.mxu0 0.0
  %161 = vmatprep.subr.mxu0 0.0
  %162 = vmatpush1.msra.mxu0 0.0
  %163 = vmatprep.subr.mxu0 0.0
  %164 = vmatpush1.msra.mxu0 0.0
  %165 = vmatprep.subr.mxu0 0.0
  %166 = vmatpush1.msra.mxu0 0.0
  %167 = vmatprep.subr.mxu0 0.0
  %168 = vmatpush1.msra.mxu0 0.0
  %169 = vmatprep.subr.mxu0 0.0
  %170 = vmatpush1.msra.mxu0 0.0
  %171 = vmatprep.subr.mxu0 0.0
  %172 = vmatpush1.msra.mxu0 0.0
  %173 = vmatprep.subr.mxu0 0.0
  %174 = vmatpush1.msra.mxu0 0.0
  %175 = vmatprep.subr.mxu0 0.0
  %176 = vmatpush1.msra.mxu0 0.0
  %177 = vmatprep.subr.mxu0 0.0
  %178 = vmatpush1.msra.mxu0 0.0
  %179 = vmatprep.subr.mxu0 0.0
  %180 = vmatpush1.msra.mxu0 0.0
  %181 = vmatprep.subr.mxu0 0.0
  %182 = vmatpush1.msra.mxu0 0.0
  %183 = vmatprep.subr.mxu0 0.0
  %184 = vmatpush1.msra.mxu0 0.0
  %185 = vmatprep.subr.mxu0 0.0
  %186 = vmatpush1.msra.mxu0 0.0
  %187 = vmatprep.subr.mxu0 0.0
  %188 = vmatpush1.msra.mxu0 0.0
  %189 = vmatprep.subr.mxu0 0.0
  %190 = vmatpush1.msra.mxu0 0.0
  %191 = vmatprep.subr.mxu0 0.0
  %192 = vmatpush1.msra.mxu0 0.0
  %193 = vmatprep.subr.mxu0 0.0
  %194 = vmatpush1.msra.mxu0 0.0
  %195 = vmatprep.subr.mxu0 0.0
  %196 = vmatpush1.msra.mxu0 0.0
  %197 = vmatprep.subr.mxu0 0.0
  %198 = vmatpush1.msra.mxu0 0.0
  %199 = vmatprep.subr.mxu0 0.0
  %200 = vmatpush1.msra.mxu0 0.0
  %201 = vmatprep.subr.mxu0 0.0
  %202 = vmatpush1.msra.mxu0 0.0
  %203 = vmatprep.subr.mxu0 0.0
  %204 = vmatpush1.msra.mxu0 0.0
  %205 = vmatprep.subr.mxu0 0.0
  %206 = vmatpush1.msra.mxu0 0.0
  %207 = vmatprep.subr.mxu0 0.0
  %208 = vmatpush1.msra.mxu0 0.0
  %209 = vmatprep.subr.mxu0 0.0
  %210 = vmatpush1.msra.mxu0 0.0
  %211 = vmatprep.mubr.f32.mxu0 0.0
  %212 = vmatmul.mubr.f32.gmra.mrb[0].mxu0 %v142
  %v213 = vpop.f32.mrb[0].mxu0
  %v214 = vadd.f32 %v138, %v213
  %v215 = vpop.f32.mrb[0].mxu0
  %216 = vmatprep.mubr.f32.mxu0 0.0
  %217 = vmatmul.mubr.f32.gmra.mrb[0].mxu0 %v145
  %v218 = vpop.f32.mrb[0].mxu0
  %v219 = vadd.f32 %v138, %v218
  %v220 = vpop.f32.mrb[0].mxu0
  %221 = vdwg.mxu0
  %v222 = vmax.f32 %v214, 0.0
  %v223 = vmax.f32 %v219, 0.0
  %v224 = vld [vmem:[%s5] sm:$0xff]
  %v225 = vld [vmem:[%s6] sm:$0x1]
  %v227 = vlaneseq
  %v228 = vshrl.u32 %v227, 7
  %v229 = vsub.s32 0, %v228
  %v230 = vrot.slane %v225, %v229
  %vm232 = vcmask 64512
  %v234 = vsel %vm232, %v222, 0
  %v237 = vsel %vm232, %v223, 0
  %239 = vmatprep.subr.mxu0 0.0
  %240 = vmatpush1.msra.mxu0 %v224
  %241 = vmatprep.subr.mxu0 0.0
  %242 = vmatpush1.msra.mxu0 0.0
  %243 = vmatprep.subr.mxu0 0.0
  %244 = vmatpush1.msra.mxu0 0.0
  %245 = vmatprep.subr.mxu0 0.0
  %246 = vmatpush1.msra.mxu0 0.0
  %247 = vmatprep.subr.mxu0 0.0
  %248 = vmatpush1.msra.mxu0 0.0
  %249 = vmatprep.subr.mxu0 0.0
  %250 = vmatpush1.msra.mxu0 0.0
  %251 = vmatprep.subr.mxu0 0.0
  %252 = vmatpush1.msra.mxu0 0.0
  %253 = vmatprep.subr.mxu0 0.0
  %254 = vmatpush1.msra.mxu0 0.0
  %255 = vmatprep.subr.mxu0 0.0
  %256 = vmatpush1.msra.mxu0 0.0
  %257 = vmatprep.subr.mxu0 0.0
  %258 = vmatpush1.msra.mxu0 0.0
  %259 = vmatprep.subr.mxu0 0.0
  %260 = vmatpush1.msra.mxu0 0.0
  %261 = vmatprep.subr.mxu0 0.0
  %262 = vmatpush1.msra.mxu0 0.0
  %263 = vmatprep.subr.mxu0 0.0
  %264 = vmatpush1.msra.mxu0 0.0
  %265 = vmatprep.subr.mxu0 0.0
  %266 = vmatpush1.msra.mxu0 0.0
  %267 = vmatprep.subr.mxu0 0.0
  %268 = vmatpush1.msra.mxu0 0.0
  %269 = vmatprep.subr.mxu0 0.0
  %270 = vmatpush1.msra.mxu0 0.0
  %271 = vmatprep.subr.mxu0 0.0
  %272 = vmatpush1.msra.mxu0 0.0
  %273 = vmatprep.subr.mxu0 0.0
  %274 = vmatpush1.msra.mxu0 0.0
  %275 = vmatprep.subr.mxu0 0.0
  %276 = vmatpush1.msra.mxu0 0.0
  %277 = vmatprep.subr.mxu0 0.0
  %278 = vmatpush1.msra.mxu0 0.0
  %279 = vmatprep.subr.mxu0 0.0
  %280 = vmatpush1.msra.mxu0 0.0
  %281 = vmatprep.subr.mxu0 0.0
  %282 = vmatpush1.msra.mxu0 0.0
  %283 = vmatprep.subr.mxu0 0.0
  %284 = vmatpush1.msra.mxu0 0.0
  %285 = vmatprep.subr.mxu0 0.0
  %286 = vmatpush1.msra.mxu0 0.0
  %287 = vmatprep.subr.mxu0 0.0
  %288 = vmatpush1.msra.mxu0 0.0
  %289 = vmatprep.subr.mxu0 0.0
  %290 = vmatpush1.msra.mxu0 0.0
  %291 = vmatprep.subr.mxu0 0.0
  %292 = vmatpush1.msra.mxu0 0.0
  %293 = vmatprep.subr.mxu0 0.0
  %294 = vmatpush1.msra.mxu0 0.0
  %295 = vmatprep.subr.mxu0 0.0
  %296 = vmatpush1.msra.mxu0 0.0
  %297 = vmatprep.subr.mxu0 0.0
  %298 = vmatpush1.msra.mxu0 0.0
  %299 = vmatprep.subr.mxu0 0.0
  %300 = vmatpush1.msra.mxu0 0.0
  %301 = vmatprep.subr.mxu0 0.0
  %302 = vmatpush1.msra.mxu0 0.0
  %303 = vmatprep.mubr.f32.mxu0 0.0
  %304 = vmatmul.mubr.f32.gmra.mrb[0].mxu0 %v234
  %v305 = vpop.f32.mrb[0].mxu0
  %v306 = vadd.f32 %v230, %v305
  %v307 = vpop.f32.mrb[0].mxu0
  %308 = vmatprep.mubr.f32.mxu0 0.0
  %309 = vmatmul.mubr.f32.gmra.mrb[0].mxu0 %v237
  %v310 = vpop.f32.mrb[0].mxu0
  %v311 = vadd.f32 %v230, %v310
  %v312 = vpop.f32.mrb[0].mxu0
  %313 = vdwg.mxu0
  %v314 = vmax.f32 %v306, 0.0
  %v315 = vmax.f32 %v311, 0.0
  %v316 = vld [vmem:[%s7] sm:$0x1]
  %v318 = vlaneseq
  %v319 = vshrl.u32 %v318, 7
  %v320 = vsub.s32 0, %v319
  %v321 = vrot.slane %v316, %v320
  %v323 = vmul.f32 %v314, %v321
  %v324 = vmul.f32 %v315, %v321
  %vm325 = vcmask 31744
  %v326 = vsel %vm325, %v323, 0.0
  %327 = vadd.xlane.f32.xlu0 %v326
  %v328 = vpop.xlane.xlu0 %327
  %v329 = vsel %vm325, %v324, 0.0
  %330 = vadd.xlane.f32.xlu0 %v329
  %v331 = vpop.xlane.xlu0 %330
  %v332 = vld [vmem:[#allocation2] sm:$0x1]
  %v334 = vlaneseq
  %v335 = vshrl.u32 %v334, 7
  %v336 = vsub.s32 0, %v335
  %v337 = vrot.slane %v332, %v336
  %v339 = vadd.f32 %v328, %v337
  %v340 = vadd.f32 %v331, %v337
  %vm341 = vcmask 7168
  %342 = vst.msk [vmem:[%s9] sm:$0xff] %vm341, %v339
  %343 = vst.msk [vmem:[%s9 + $0x8] sm:$0xff] %vm341, %v340
  // Predicated region
  $region38: #{tpu_custom_call.1} parent=0 // pred_check
    _
  $region39: #{tpu_custom_call.1} parent=0 // pred_check_branch
    %345 = sbr.rel (0) target = $region41
  $region40: #{tpu_custom_call.1} parent=0 // pred_region
    _
  $region41: #{tpu_custom_call.1} parent=0 // pred_fallthru
    _
  // Predicated region
  $region42: #{tpu_custom_call.1} parent=0 // pred_check
    _
  $region43: #{tpu_custom_call.1} parent=0 // pred_check_branch
    %347 = sbr.rel (0) target = $region45
  $region44: #{tpu_custom_call.1} parent=0 // pred_region
    _
  $region45: #{tpu_custom_call.1} parent=0 // pred_fallthru
    _

</llo_original>
